<compile_context>
chip_gen: v6e
topology: v6e:2x2x1
jax: 0.10.0
libtpu: 0.0.40
codegen_flags: <defaults>
</compile_context>

<pallas_src>
import functools

import jax
import jax.numpy as jnp
from jax.experimental import pallas as pl
from jax.experimental.pallas import tpu as pltpu


def _round_up(x, m):
    return ((x + m - 1) // m) * m


def _pairwise_partial_kernel(xr_ref, xc_ref, sqr_ref, sqc_ref, psum_ref, acc_ref,
                             *, tm, tn, nb, n_valid, n_padded):
    """Accumulate sum_{i != j} 1/(1 + ||x_i - x_j||^2) contributions of this row block.

    Cyclic column schedule: column block bj = (bi + s) % nb.  The (1,1) VMEM scratch holds
    the running row-block partial; it is flushed into the (1, 8, 128) output block (value
    at [0,0,0], zeros elsewhere) only at the last column step.
    """
    bi = pl.program_id(0)
    s = pl.program_id(1)
    bj = (bi + s) % nb

    @pl.when(s == 0)
    def _init():
        acc_ref[...] = jnp.zeros_like(acc_ref)

    # Symmetry weight: diagonal offset (s == 0) counted once; the wrap offset s == nb/2
    # (nb even) is visited from both sides, so it is also counted once; everything else 2x.
    if nb % 2 == 0:
        weight = jnp.where((s == 0) | (s == nb // 2), jnp.float32(1.0), jnp.float32(2.0))
    else:
        weight = jnp.where(s == 0, jnp.float32(1.0), jnp.float32(2.0))

    # ||xr - xc||^2 = sq_r + sq_c - 2 <xr, xc>; norms are precomputed (hoisted out of N^2).
    gram = jax.lax.dot_general(                               # (tm, tn) on the MXU, f32
        xr_ref[...], xc_ref[...], (((1,), (1,)), ((), ())),
        preferred_element_type=jnp.float32)
    dkl2 = jnp.maximum(sqr_ref[...] + sqc_ref[...] - 2.0 * gram, 0.0)   # clamp cancellation
    recip = pl.reciprocal(1.0 + dkl2, approx=True)            # EUP, no Newton refine

    # Only diagonal blocks (i == j masking) and, when padding exists, edge blocks need the
    # iota/compare/where machinery; interior off-diagonal blocks take the fast path.
    if n_padded > n_valid:
        needs_mask = (s == 0) | (bi == nb - 1) | (bj == nb - 1)
    else:
        needs_mask = (s == 0)

    @pl.when(jnp.logical_not(needs_mask))
    def _fast():
        acc_ref[...] += weight * jnp.sum(recip, keepdims=True)

    @pl.when(needs_mask)
    def _masked():
        rows = bi * tm + jax.lax.broadcasted_iota(jnp.int32, (tm, tn), 0)
        cols = bj * tn + jax.lax.broadcasted_iota(jnp.int32, (tm, tn), 1)
        keep = (rows < n_valid) & (cols < n_valid) & (rows != cols)
        acc_ref[...] += weight * jnp.sum(jnp.where(keep, recip, 0.0), keepdims=True)

    @pl.when(s == pl.num_programs(1) - 1)
    def _write():
        # Deposit the row-block partial at element [0, 0, 0]; zeros elsewhere so the
        # finalize kernel can use a plain full sum.  Runs once per row block only.
        sub = jax.lax.broadcasted_iota(jnp.int32, (1, 8, 128), 1)
        lane = jax.lax.broadcasted_iota(jnp.int32, (1, 8, 128), 2)
        onehot = ((sub == 0) & (lane == 0)).astype(jnp.float32)
        psum_ref[...] = acc_ref[...].reshape(1, 1, 1) * onehot


def _finalize_kernel(psums_ref, xi_ref, xj_ref, pij_ref, out_ref, *, n_topics):
    """loss = sum(pij*(log pij + log s)) + log(part) * sum(pij),  s = T + ||xi - xj||^2."""
    p = psums_ref[...]                                        # (nb, 8, 128), only [.,0,0] != 0
    part_11 = jnp.sum(jnp.sum(p, axis=0), keepdims=True)      # (1, 1); diagonal already excluded

    xi = xi_ref[...]                                          # (B, Tpad)
    xj = xj_ref[...]
    d = xi - xj
    # sum(1 + d^2) == T + ||d||^2 (padding lanes are zero, T is the *unpadded* n_topics)
    s = jnp.sum(d * d, axis=1, keepdims=True) + jnp.float32(n_topics)     # (B, 1)

    pij = pij_ref[...]                                        # (B, 1)
    batch_11 = jnp.sum(pij * (jnp.log(pij) + jnp.log(s)), keepdims=True)  # (1, 1)
    pijsum_11 = jnp.sum(pij, keepdims=True)                   # (1, 1)
    out_ref[...] = batch_11 + jnp.log(part_11) * pijsum_11


def topicsne_forward(weight, pij, i, j, *, block_rows=None):
    """weight: (n_points, n_topics) f32; pij: (B,) f32 (>0); i, j: (B,) int32."""
    weight = weight.astype(jnp.float32)
    n, t = weight.shape
    b = pij.shape[0]

    t_pad = _round_up(t, 128)                   # lane-align the MXU contraction (zeros are exact)
    if block_rows is None:
        block_rows = min(_round_up(n, 128), 1024)
    block_rows = _round_up(block_rows, 128)     # lane-dense (tm, tn) gram/recip tiles
    n_pad = _round_up(n, block_rows)
    nb = n_pad // block_rows
    # Cyclic symmetric schedule: offsets s = 0 .. S-1, column block = (bi + s) % nb.
    n_col_steps = nb // 2 + 1 if nb % 2 == 0 else (nb + 1) // 2

    w = jnp.pad(weight, ((0, n_pad - n), (0, t_pad - t)))
    sq = jnp.sum(w * w, axis=1)                 # hoisted row norms, O(N*T) plain-JAX prologue
    sq_row = sq.reshape(n_pad, 1)
    sq_col = sq.reshape(1, n_pad)
    xi = w[i]                                   # host-side glue: tiny (B, Tpad) gathers
    xj = w[j]
    pij2 = pij.reshape(b, 1).astype(jnp.float32)

    # --- Kernel 1: cyclic-scheduled, symmetric pairwise reduction -> per-row-block partials ---
    pairwise_kernel = functools.partial(
        _pairwise_partial_kernel, tm=block_rows, tn=block_rows,
        nb=nb, n_valid=n, n_padded=n_pad)
    psums = pl.pallas_call(
        pairwise_kernel,
        out_shape=jax.ShapeDtypeStruct((nb, 8, 128), jnp.float32),
        grid_spec=pltpu.PrefetchScalarGridSpec(
            num_scalar_prefetch=0,
            grid=(nb, n_col_steps),
            in_specs=[
                pl.BlockSpec((block_rows, t_pad), lambda bi, s: (bi, 0)),
                pl.BlockSpec((block_rows, t_pad), lambda bi, s: ((bi + s) % nb, 0)),
                pl.BlockSpec((block_rows, 1), lambda bi, s: (bi, 0)),
                pl.BlockSpec((1, block_rows), lambda bi, s: (0, (bi + s) % nb)),
            ],
            out_specs=pl.BlockSpec((1, 8, 128), lambda bi, s: (bi, 0, 0)),
            scratch_shapes=[pltpu.VMEM((1, 1), jnp.float32)],
        ),
        compiler_params=pltpu.CompilerParams(
            dimension_semantics=("parallel", "arbitrary"),   # row blocks shard across TCs (v7x)
            vmem_limit_bytes=48 * 1024 * 1024,               # safe on v7x's 64 MiB physical VMEM
        ),
    )(w, w, sq_row, sq_col)

    # --- Kernel 2: tiny gridless finalize (part, batch term, KL). Kept separate because
    #     folding it into kernel 1 would alias one output block across the parallel row axis.
    finalize_kernel = functools.partial(_finalize_kernel, n_topics=t)
    vmem = pltpu.MemorySpace.VMEM
    loss = pl.pallas_call(
        finalize_kernel,
        out_shape=jax.ShapeDtypeStruct((1, 1), jnp.float32),
        in_specs=[
            pl.BlockSpec(memory_space=vmem),   # psums
            pl.BlockSpec(memory_space=vmem),   # xi
            pl.BlockSpec(memory_space=vmem),   # xj
            pl.BlockSpec(memory_space=vmem),   # pij
        ],
        out_specs=pl.BlockSpec(memory_space=vmem),
    )(psums, xi, xj, pij2)
    return loss[0, 0]


def topicsne_ref(weight, pij, i, j):
    """Pure-JAX reference mirroring the PyTorch forward exactly."""
    x = weight
    n = x.shape[0]
    diff = x[:, None, :] - x[None, :, :]
    dkl2 = jnp.sum(diff * diff, axis=2)
    part = jnp.sum((1.0 + dkl2) ** -1.0) - n
    xi = weight[i]
    xj = weight[j]
    num = jnp.sum(1.0 + (xi - xj) ** 2.0, axis=1) ** -1.0
    qij = num / part
    return jnp.sum(pij * (jnp.log(pij) - jnp.log(qij)))


def _check(key, n_points, n_topics, batch, block_rows=None):
    k_w, k_p, k_i, k_j = jax.random.split(key, 4)
    w = jax.random.normal(k_w, (n_points, n_topics), dtype=jnp.float32)
    pij = jax.random.uniform(k_p, (batch,), minval=0.05, maxval=1.0, dtype=jnp.float32)
    pij = pij / jnp.sum(pij)       # probability-like, strictly positive
    i_idx = jax.random.randint(k_i, (batch,), 0, n_points, dtype=jnp.int32)
    j_idx = jax.random.randint(k_j, (batch,), 0, n_points, dtype=jnp.int32)

    loss = jax.block_until_ready(topicsne_forward(w, pij, i_idx, j_idx, block_rows=block_rows))
    loss_ref = jax.block_until_ready(topicsne_ref(w, pij, i_idx, j_idx))
    assert jnp.allclose(loss, loss_ref, rtol=1e-3, atol=1e-5), (n_points, loss, loss_ref)


if __name__ == "__main__":
    key = jax.random.PRNGKey(0)
    k1, k2, k3, k4 = jax.random.split(key, 4)

    # Toy sizes matching the module (n_dim / the `topic` Linear is unused in forward);
    # single 128-row block, diagonal-masked path.
    _check(k1, n_points=32, n_topics=16, batch=8)

    # Padding + even-nb wrap-offset weight + edge-block masking (nb=2).
    _check(k2, n_points=200, n_topics=16, batch=8, block_rows=128)

    # Multi-block, odd nb, unmasked fast path + weight-2 symmetry (nb=3, no padding).
    _check(k3, n_points=384, n_topics=16, batch=8, block_rows=128)

    # Default configuration: exercises a full 1024-row tile under the 48 MiB VMEM budget.
    _check(k4, n_points=1000, n_topics=16, batch=8)

    print("KERNEL_OK")
</pallas_src>

<mosaic_0001>
module attributes {stable_mosaic.version = 11 : i64} {
  func.func @_pairwise_partial_kernel(%arg0: i32, %arg1: i32, %arg2: memref<128x128xf32, #tpu.memory_space<vmem>>, %arg3: memref<128x128xf32, #tpu.memory_space<vmem>>, %arg4: memref<128x1xf32, #tpu.memory_space<vmem>>, %arg5: memref<1x128xf32, #tpu.memory_space<vmem>>, %arg6: memref<1x8x128xf32, #tpu.memory_space<vmem>>, %arg7: memref<1x1xf32, #tpu.memory_space<vmem>>) attributes {dimension_semantics = [#tpu.dimension_semantics<parallel>, #tpu.dimension_semantics<arbitrary>], iteration_bounds = array<i64: 1, 1>, scalar_prefetch = 0 : i64, scratch_operands = 1 : i64, tpu.core_type = #tpu.core_type<tc>, window_params = [{transform_indices = @transform_0, window_bounds = array<i64: 128, 128>}, {transform_indices = @transform_1, window_bounds = array<i64: 128, 128>}, {transform_indices = @transform_2, window_bounds = array<i64: 128, 1>}, {transform_indices = @transform_3, window_bounds = array<i64: 1, 128>}, {transform_indices = @transform_4, window_bounds = array<i64: 1, 8, 128>}]} {
    %0 = arith.addi %arg0, %arg1 : i32
    %c1_i32 = arith.constant 1 : i32
    %c0_i32 = arith.constant 0 : i32
    %1 = arith.cmpi eq, %c1_i32, %c0_i32 : i32
    %c1_i32_0 = arith.constant 1 : i32
    %2 = arith.select %1, %c1_i32_0, %c1_i32 : i32
    %3 = arith.remsi %0, %2 : i32
    %c0_i32_1 = arith.constant 0 : i32
    %4 = arith.cmpi ne, %3, %c0_i32_1 : i32
    %c0_i32_2 = arith.constant 0 : i32
    %5 = arith.cmpi slt, %3, %c0_i32_2 : i32
    %c0_i32_3 = arith.constant 0 : i32
    %6 = arith.cmpi slt, %2, %c0_i32_3 : i32
    %7 = arith.xori %5, %6 : i1
    %8 = arith.andi %7, %4 : i1
    %9 = arith.addi %3, %2 : i32
    %10 = arith.select %8, %9, %3 : i32
    %c0_i32_4 = arith.constant 0 : i32
    %11 = arith.cmpi eq, %arg1, %c0_i32_4 : i32
    %12 = arith.extui %11 : i1 to i32
    %c0_i32_5 = arith.constant 0 : i32
    %13 = arith.cmpi ne, %12, %c0_i32_5 : i32
    scf.if %13 {
      %cst_26 = arith.constant 0.000000e+00 : f32
      %45 = vector.broadcast %cst_26 : f32 to vector<1x1xf32>
      %c0_27 = arith.constant 0 : index
      %c0_28 = arith.constant 0 : index
      %46 = vector.load %arg7[%c0_27, %c0_28] : memref<1x1xf32, #tpu.memory_space<vmem>>, vector<1x1xf32>
      tpu.vector_store %arg7[%c0_27, %c0_28], %45 {strides = array<i32>} : memref<1x1xf32, #tpu.memory_space<vmem>>, vector<1x1xf32>,
    } else {
    }
    %c0_i32_6 = arith.constant 0 : i32
    %14 = arith.cmpi eq, %arg1, %c0_i32_6 : i32
    %cst = arith.constant 1.000000e+00 : f32
    %cst_7 = arith.constant 2.000000e+00 : f32
    %15 = arith.select %14, %cst, %cst_7 : f32
    %c0 = arith.constant 0 : index
    %c0_8 = arith.constant 0 : index
    %16 = vector.load %arg2[%c0, %c0_8] : memref<128x128xf32, #tpu.memory_space<vmem>>, vector<128x128xf32>
    %c0_9 = arith.constant 0 : index
    %c0_10 = arith.constant 0 : index
    %17 = vector.load %arg3[%c0_9, %c0_10] : memref<128x128xf32, #tpu.memory_space<vmem>>, vector<128x128xf32>
    %cst_11 = arith.constant dense<0.000000e+00> : vector<128x128xf32>
    %18 = tpu.matmul %16, %17, %cst_11 {dimension_numbers = #tpu.dot_dimension_numbers<[1], [1], [0], [0], [0, 0, 1, 0], [], []>} : vector<128x128xf32>, vector<128x128xf32>, vector<128x128xf32> -> vector<128x128xf32>
    %c0_12 = arith.constant 0 : index
    %c0_13 = arith.constant 0 : index
    %19 = vector.load %arg4[%c0_12, %c0_13] : memref<128x1xf32, #tpu.memory_space<vmem>>, vector<128x1xf32>
    %c0_14 = arith.constant 0 : index
    %c0_15 = arith.constant 0 : index
    %20 = vector.load %arg5[%c0_14, %c0_15] : memref<1x128xf32, #tpu.memory_space<vmem>>, vector<1x128xf32>
    %21 = vector.broadcast %19 : vector<128x1xf32> to vector<128x128xf32>
    %22 = vector.broadcast %20 : vector<1x128xf32> to vector<128x128xf32>
    %23 = arith.addf %21, %22 : vector<128x128xf32>
    %cst_16 = arith.constant 2.000000e+00 : f32
    %24 = vector.broadcast %cst_16 : f32 to vector<128x128xf32>
    %25 = arith.mulf %24, %18 : vector<128x128xf32>
    %26 = arith.subf %23, %25 : vector<128x128xf32>
    %cst_17 = arith.constant 0.000000e+00 : f32
    %27 = vector.broadcast %cst_17 : f32 to vector<128x128xf32>
    %28 = arith.maximumf %26, %27 : vector<128x128xf32>
    %cst_18 = arith.constant 1.000000e+00 : f32
    %29 = vector.broadcast %cst_18 : f32 to vector<128x128xf32>
    %30 = arith.addf %29, %28 : vector<128x128xf32>
    %31 = tpu.reciprocal %30 {approx = true} : vector<128x128xf32> -> vector<128x128xf32>
    %c0_i32_19 = arith.constant 0 : i32
    %32 = arith.cmpi eq, %arg1, %c0_i32_19 : i32
    %c0_i32_20 = arith.constant 0 : i32
    %33 = arith.cmpi eq, %arg0, %c0_i32_20 : i32
    %34 = arith.ori %32, %33 : i1
    %c0_i32_21 = arith.constant 0 : i32
    %35 = arith.cmpi eq, %10, %c0_i32_21 : i32
    %36 = arith.ori %34, %35 : i1
    %true = arith.constant true
    %37 = arith.xori %36, %true : i1
    %38 = arith.extui %37 : i1 to i32
    %c0_i32_22 = arith.constant 0 : i32
    %39 = arith.cmpi ne, %38, %c0_i32_22 : i32
    scf.if %39 {
      %c0_26 = arith.constant 0 : index
      %c0_27 = arith.constant 0 : index
      %45 = vector.load %arg7[%c0_26, %c0_27] : memref<1x1xf32, #tpu.memory_space<vmem>>, vector<1x1xf32>
      %46 = vector.shape_cast %31 : vector<128x128xf32> to vector<1x128x128xf32>
      %cst_28 = arith.constant dense<0.000000e+00> : vector<1xf32>
      %47 = vector.multi_reduction <add>, %46, %cst_28 [1, 2] : vector<1x128x128xf32> to vector<1xf32>
      %48 = vector.shape_cast %47 : vector<1xf32> to vector<1x1x1xf32>
      %49 = vector.extract %48[0, 0, 0] : f32 from vector<1x1x1xf32>
      %50 = vector.broadcast %49 : f32 to vector<1x1xf32>
      %51 = vector.broadcast %15 : f32 to vector<1x1xf32>
      %52 = arith.mulf %51, %50 : vector<1x1xf32>
      %53 = arith.addf %45, %52 : vector<1x1xf32>
      %c0_29 = arith.constant 0 : index
      %c0_30 = arith.constant 0 : index
      %54 = vector.load %arg7[%c0_29, %c0_30] : memref<1x1xf32, #tpu.memory_space<vmem>>, vector<1x1xf32>
      tpu.vector_store %arg7[%c0_29, %c0_30], %53 {strides = array<i32>} : memref<1x1xf32, #tpu.memory_space<vmem>>, vector<1x1xf32>,
    } else {
    }
    %40 = arith.extui %36 : i1 to i32
    %c0_i32_23 = arith.constant 0 : i32
    %41 = arith.cmpi ne, %40, %c0_i32_23 : i32
    scf.if %41 {
      %c128_i32 = arith.constant 128 : i32
      %45 = arith.muli %arg0, %c128_i32 : i32
      %46 = tpu.iota {dimensions = array<i32: 0>} : vector<128x128xi32>
      %47 = vector.broadcast %45 : i32 to vector<128x128xi32>
      %48 = arith.addi %47, %46 : vector<128x128xi32>
      %c128_i32_26 = arith.constant 128 : i32
      %49 = arith.muli %10, %c128_i32_26 : i32
      %50 = tpu.iota {dimensions = array<i32: 1>} : vector<128x128xi32>
      %51 = vector.broadcast %49 : i32 to vector<128x128xi32>
      %52 = arith.addi %51, %50 : vector<128x128xi32>
      %c32_i32 = arith.constant 32 : i32
      %53 = vector.broadcast %c32_i32 : i32 to vector<128x128xi32>
      %54 = arith.cmpi slt, %48, %53 : vector<128x128xi32>
      %c32_i32_27 = arith.constant 32 : i32
      %55 = vector.broadcast %c32_i32_27 : i32 to vector<128x128xi32>
      %56 = arith.cmpi slt, %52, %55 : vector<128x128xi32>
      %57 = arith.andi %54, %56 : vector<128x128xi1>
      %58 = arith.cmpi ne, %48, %52 : vector<128x128xi32>
      %59 = arith.andi %57, %58 : vector<128x128xi1>
      %c0_28 = arith.constant 0 : index
      %c0_29 = arith.constant 0 : index
      %60 = vector.load %arg7[%c0_28, %c0_29] : memref<1x1xf32, #tpu.memory_space<vmem>>, vector<1x1xf32>
      %cst_30 = arith.constant 0.000000e+00 : f32
      %61 = vector.broadcast %cst_30 : f32 to vector<128x128xf32>
      %62 = arith.select %59, %31, %61 : vector<128x128xi1>, vector<128x128xf32>
      %63 = vector.shape_cast %62 : vector<128x128xf32> to vector<1x128x128xf32>
      %cst_31 = arith.constant dense<0.000000e+00> : vector<1xf32>
      %64 = vector.multi_reduction <add>, %63, %cst_31 [1, 2] : vector<1x128x128xf32> to vector<1xf32>
      %65 = vector.shape_cast %64 : vector<1xf32> to vector<1x1x1xf32>
      %66 = vector.extract %65[0, 0, 0] : f32 from vector<1x1x1xf32>
      %67 = vector.broadcast %66 : f32 to vector<1x1xf32>
      %68 = vector.broadcast %15 : f32 to vector<1x1xf32>
      %69 = arith.mulf %68, %67 : vector<1x1xf32>
      %70 = arith.addf %60, %69 : vector<1x1xf32>
      %c0_32 = arith.constant 0 : index
      %c0_33 = arith.constant 0 : index
      %71 = vector.load %arg7[%c0_32, %c0_33] : memref<1x1xf32, #tpu.memory_space<vmem>>, vector<1x1xf32>
      tpu.vector_store %arg7[%c0_32, %c0_33], %70 {strides = array<i32>} : memref<1x1xf32, #tpu.memory_space<vmem>>, vector<1x1xf32>,
    } else {
    }
    %c0_i32_24 = arith.constant 0 : i32
    %42 = arith.cmpi eq, %arg1, %c0_i32_24 : i32
    %43 = arith.extui %42 : i1 to i32
    %c0_i32_25 = arith.constant 0 : i32
    %44 = arith.cmpi ne, %43, %c0_i32_25 : i32
    scf.if %44 {
      %45 = tpu.iota {dimensions = array<i32: 1>} : vector<1x8x128xi32>
      %46 = tpu.iota {dimensions = array<i32: 2>} : vector<1x8x128xi32>
      %c0_i32_26 = arith.constant 0 : i32
      %47 = vector.broadcast %c0_i32_26 : i32 to vector<1x8x128xi32>
      %48 = arith.cmpi eq, %45, %47 : vector<1x8x128xi32>
      %c0_i32_27 = arith.constant 0 : i32
      %49 = vector.broadcast %c0_i32_27 : i32 to vector<1x8x128xi32>
      %50 = arith.cmpi eq, %46, %49 : vector<1x8x128xi32>
      %51 = arith.andi %48, %50 : vector<1x8x128xi1>
      %52 = arith.extui %51 : vector<1x8x128xi1> to vector<1x8x128xi32>
      %53 = arith.sitofp %52 : vector<1x8x128xi32> to vector<1x8x128xf32>
      %c0_28 = arith.constant 0 : index
      %c0_29 = arith.constant 0 : index
      %54 = vector.load %arg7[%c0_28, %c0_29] : memref<1x1xf32, #tpu.memory_space<vmem>>, vector<1x1xf32>
      %55 = vector.shape_cast %54 : vector<1x1xf32> to vector<1x1x1xf32>
      %56 = vector.broadcast %55 : vector<1x1x1xf32> to vector<1x8x128xf32>
      %57 = arith.mulf %56, %53 : vector<1x8x128xf32>
      %c0_30 = arith.constant 0 : index
      %c0_31 = arith.constant 0 : index
      %c0_32 = arith.constant 0 : index
      %58 = vector.load %arg6[%c0_30, %c0_31, %c0_32] : memref<1x8x128xf32, #tpu.memory_space<vmem>>, vector<1x8x128xf32>
      tpu.vector_store %arg6[%c0_30, %c0_31, %c0_32], %57 {strides = array<i32>} : memref<1x8x128xf32, #tpu.memory_space<vmem>>, vector<1x8x128xf32>,
    } else {
    }
    return
  }
  func.func @transform_0(%arg0: i32, %arg1: i32) -> (i32, i32) {
    %c0_i32 = arith.constant 0 : i32
    %c0_i32_0 = arith.constant 0 : i32
    return %arg0, %c0_i32 : i32, i32
  }
  func.func @transform_1(%arg0: i32, %arg1: i32) -> (i32, i32) {
    %0 = arith.addi %arg0, %arg1 : i32
    %c1_i32 = arith.constant 1 : i32
    %c0_i32 = arith.constant 0 : i32
    %1 = arith.cmpi eq, %c1_i32, %c0_i32 : i32
    %c1_i32_0 = arith.constant 1 : i32
    %2 = arith.select %1, %c1_i32_0, %c1_i32 : i32
    %3 = arith.remsi %0, %2 : i32
    %c0_i32_1 = arith.constant 0 : i32
    %4 = arith.cmpi ne, %3, %c0_i32_1 : i32
    %c0_i32_2 = arith.constant 0 : i32
    %5 = arith.cmpi slt, %3, %c0_i32_2 : i32
    %c0_i32_3 = arith.constant 0 : i32
    %6 = arith.cmpi slt, %2, %c0_i32_3 : i32
    %7 = arith.xori %5, %6 : i1
    %8 = arith.andi %7, %4 : i1
    %9 = arith.addi %3, %2 : i32
    %10 = arith.select %8, %9, %3 : i32
    %c0_i32_4 = arith.constant 0 : i32
    %c0_i32_5 = arith.constant 0 : i32
    return %10, %c0_i32_4 : i32, i32
  }
  func.func @transform_2(%arg0: i32, %arg1: i32) -> (i32, i32) {
    %c0_i32 = arith.constant 0 : i32
    %c0_i32_0 = arith.constant 0 : i32
    return %arg0, %c0_i32 : i32, i32
  }
  func.func @transform_3(%arg0: i32, %arg1: i32) -> (i32, i32) {
    %0 = arith.addi %arg0, %arg1 : i32
    %c1_i32 = arith.constant 1 : i32
    %c0_i32 = arith.constant 0 : i32
    %1 = arith.cmpi eq, %c1_i32, %c0_i32 : i32
    %c1_i32_0 = arith.constant 1 : i32
    %2 = arith.select %1, %c1_i32_0, %c1_i32 : i32
    %3 = arith.remsi %0, %2 : i32
    %c0_i32_1 = arith.constant 0 : i32
    %4 = arith.cmpi ne, %3, %c0_i32_1 : i32
    %c0_i32_2 = arith.constant 0 : i32
    %5 = arith.cmpi slt, %3, %c0_i32_2 : i32
    %c0_i32_3 = arith.constant 0 : i32
    %6 = arith.cmpi slt, %2, %c0_i32_3 : i32
    %7 = arith.xori %5, %6 : i1
    %8 = arith.andi %7, %4 : i1
    %9 = arith.addi %3, %2 : i32
    %10 = arith.select %8, %9, %3 : i32
    %c0_i32_4 = arith.constant 0 : i32
    %c0_i32_5 = arith.constant 0 : i32
    return %c0_i32_4, %10 : i32, i32
  }
  func.func @transform_4(%arg0: i32, %arg1: i32) -> (i32, i32, i32) {
    %c0_i32 = arith.constant 0 : i32
    %c0_i32_0 = arith.constant 0 : i32
    %c0_i32_1 = arith.constant 0 : i32
    return %arg0, %c0_i32, %c0_i32_0 : i32, i32, i32
  }
}

</mosaic_0001>

<llo_original>
// kernel: tpu_custom_call.1
$region0: #{tpu_custom_call.1}
  #allocation0 [shape = 'u32[]', space=smem, size = 0x4, offset = 0x4, fixed_abs, tag = 'smem constant byte address 0x4 - core index']
  #allocation1 [shape = 'u32[144,128]{1,0:T(1,128)}', space=vmem, size = 0x12000, scoped, tag = 'internal scratch']
  #allocation2 [shape = 'f32[1,1]{1,0:T(1,128)}', space=vmem, size = 0x200, scoped, tag = 'scratch operand']
  %s0 = inlined_call_operand.vmem [shape: f32[128,128], index: 0, kind: input, shape index: {}]
  %s1 = inlined_call_operand.hbm [shape: f32[128,128], index: 1, kind: input, shape index: {}]
  %s2 = inlined_call_operand.vmem [shape: f32[128,1], index: 2, kind: input, shape index: {}]
  %s3 = inlined_call_operand.vmem [shape: f32[1,128], index: 3, kind: input, shape index: {}]
  %s4 = inlined_call_operand.hbm [shape: f32[1,8,128], index: 4, kind: output, shape index: {}]
  %s5 = sld [smem:[#allocation0]]
  $region38: #{tpu_custom_call.1} parent=0
    _
  %s7 = ssub.s32 1, %s5
  %s8 = scalar_select 0, %s7, %s5
  $region1: #{tpu_custom_call.1} parent=0
    #allocation3 [shape = 'u8[65536]{0}', space=vmem, size = 0x10000, scoped, tag = 'input window, operand 1, single buffered']
    #allocation4 [shape = 's32[1]{0}', space=sflag, size = 0x4, scoped, tag = 'scoped memory for tpu_custom_call.1']
    #allocation5 [shape = 's32[1]{0}', space=sflag, size = 0x4, scoped, tag = 'scoped memory for tpu_custom_call.1']
    #allocation6 [shape = 'u8[4096]{0}', space=vmem, size = 0x1000, scoped, tag = 'output window, operand 0, single buffered']
    %9 = vsyncpa [#allocation4], 0
    %10 = vsyncpa [#allocation5], 0
    // Predicated region
    $region2: #{tpu_custom_call.1} parent=1 // pred_check
      _
    $region3: #{tpu_custom_call.1} parent=1 // pred_check_branch
      %12 = sbr.rel (0) target = $region5
    $region4: #{tpu_custom_call.1} parent=1 // pred_region
      _
    $region5: #{tpu_custom_call.1} parent=1 // pred_fallthru
      _
    // Predicated region
    $region6: #{tpu_custom_call.1} parent=1 // pred_check
      _
    $region7: #{tpu_custom_call.1} parent=1 // pred_check_branch
      %14 = sbr.rel (0) target = $region9
    $region8: #{tpu_custom_call.1} parent=1 // pred_region
      %s16 = ssub.s32 2048, 2048
      %17 = vsyncadd [#allocation4], %s16
      %s18 = sshll.u32 [#allocation3], 4
      %s19 = int_to_ptr.vmem [resolvable:$true] %s18
      %24 = dma.hbm_to_vmem [thread:$0]  %s1, 2048, %s19, [#allocation4], 128, 128, 8
    $region9: #{tpu_custom_call.1} parent=1 // pred_fallthru
      _
    // Predicated region
    $region10: #{tpu_custom_call.1} parent=1 // pred_check
      _
    $region11: #{tpu_custom_call.1} parent=1 // pred_check_branch
      %26 = sbr.rel (0) target = $region13
    $region12: #{tpu_custom_call.1} parent=1 // pred_region
      _
    $region13: #{tpu_custom_call.1} parent=1 // pred_fallthru
      _
    // Predicated region
    $region14: #{tpu_custom_call.1} parent=1 // pred_check
      _
    $region15: #{tpu_custom_call.1} parent=1 // pred_check_branch
      %28 = sbr.rel (0) target = $region17
    $region16: #{tpu_custom_call.1} parent=1 // pred_region
      _
    $region17: #{tpu_custom_call.1} parent=1 // pred_fallthru
      _
    // Predicated region
    $region18: #{tpu_custom_call.1} parent=1 // pred_check
      _
    $region19: #{tpu_custom_call.1} parent=1 // pred_check_branch
      %30 = sbr.rel (0) target = $region21
    $region20: #{tpu_custom_call.1} parent=1 // pred_region
      %31 = dma.done [#allocation4], 2048
    $region21: #{tpu_custom_call.1} parent=1 // pred_fallthru
      _
    %p32 = scmp.eq.s32.totalorder 0, 0
    // Predicated region
    $region22: #{tpu_custom_call.1} parent=1 // pred_check
      %p33 = pneg %p32
    $region23: #{tpu_custom_call.1} parent=1 // pred_check_branch
      %35 = sbr.rel (%p33) target = $region25
    $region24: #{tpu_custom_call.1} parent=1 // pred_region
      %vm36 = vcmask 0
      %37 = vst.msk [vmem:[#allocation2] sm:$0x1] %vm36, 0.0
    $region25: #{tpu_custom_call.1} parent=1 // pred_fallthru
      _
    %s38 = scalar_select %p32, 1.0, 2.0
    %v39 = vld [vmem:[%s0] sm:$0xff]
    %v40 = vld [vmem:[%s0 + $0x8] sm:$0xff]
    %v41 = vld [vmem:[%s0 + $0x10] sm:$0xff]
    %v42 = vld [vmem:[%s0 + $0x18] sm:$0xff]
    %v43 = vld [vmem:[%s0 + $0x20] sm:$0xff]
    %v44 = vld [vmem:[%s0 + $0x28] sm:$0xff]
    %v45 = vld [vmem:[%s0 + $0x30] sm:$0xff]
    %v46 = vld [vmem:[%s0 + $0x38] sm:$0xff]
    %v47 = vld [vmem:[%s0 + $0x40] sm:$0xff]
    %v48 = vld [vmem:[%s0 + $0x48] sm:$0xff]
    %v49 = vld [vmem:[%s0 + $0x50] sm:$0xff]
    %v50 = vld [vmem:[%s0 + $0x58] sm:$0xff]
    %v51 = vld [vmem:[%s0 + $0x60] sm:$0xff]
    %v52 = vld [vmem:[%s0 + $0x68] sm:$0xff]
    %v53 = vld [vmem:[%s0 + $0x70] sm:$0xff]
    %v54 = vld [vmem:[%s0 + $0x78] sm:$0xff]
    %v55 = vld [vmem:[#allocation3] sm:$0xff]
    %v56 = vld [vmem:[#allocation3 + $0x8] sm:$0xff]
    %v57 = vld [vmem:[#allocation3 + $0x10] sm:$0xff]
    %v58 = vld [vmem:[#allocation3 + $0x18] sm:$0xff]
    %v59 = vld [vmem:[#allocation3 + $0x20] sm:$0xff]
    %v60 = vld [vmem:[#allocation3 + $0x28] sm:$0xff]
    %v61 = vld [vmem:[#allocation3 + $0x30] sm:$0xff]
    %v62 = vld [vmem:[#allocation3 + $0x38] sm:$0xff]
    %v63 = vld [vmem:[#allocation3 + $0x40] sm:$0xff]
    %v64 = vld [vmem:[#allocation3 + $0x48] sm:$0xff]
    %v65 = vld [vmem:[#allocation3 + $0x50] sm:$0xff]
    %v66 = vld [vmem:[#allocation3 + $0x58] sm:$0xff]
    %v67 = vld [vmem:[#allocation3 + $0x60] sm:$0xff]
    %v68 = vld [vmem:[#allocation3 + $0x68] sm:$0xff]
    %v69 = vld [vmem:[#allocation3 + $0x70] sm:$0xff]
    %v70 = vld [vmem:[#allocation3 + $0x78] sm:$0xff]
    %71 = vmatprep.subr.mxu0 0.0
    %72 = vmatpush1.xpose.msra.mxu0 %v70
    %73 = vmatprep.subr.mxu0 0.0
    %74 = vmatpush1.xpose.msra.mxu0 %v69
    %75 = vmatprep.subr.mxu0 0.0
    %76 = vmatpush1.xpose.msra.mxu0 %v68
    %77 = vmatprep.subr.mxu0 0.0
    %78 = vmatpush1.xpose.msra.mxu0 %v67
    %79 = vmatprep.subr.mxu0 0.0
    %80 = vmatpush1.xpose.msra.mxu0 %v66
    %81 = vmatprep.subr.mxu0 0.0
    %82 = vmatpush1.xpose.msra.mxu0 %v65
    %83 = vmatprep.subr.mxu0 0.0
    %84 = vmatpush1.xpose.msra.mxu0 %v64
    %85 = vmatprep.subr.mxu0 0.0
    %86 = vmatpush1.xpose.msra.mxu0 %v63
    %87 = vmatprep.subr.mxu0 0.0
    %88 = vmatpush1.xpose.msra.mxu0 %v62
    %89 = vmatprep.subr.mxu0 0.0
    %90 = vmatpush1.xpose.msra.mxu0 %v61
    %91 = vmatprep.subr.mxu0 0.0
    %92 = vmatpush1.xpose.msra.mxu0 %v60
    %93 = vmatprep.subr.mxu0 0.0
    %94 = vmatpush1.xpose.msra.mxu0 %v59
    %95 = vmatprep.subr.mxu0 0.0
    %96 = vmatpush1.xpose.msra.mxu0 %v58
    %97 = vmatprep.subr.mxu0 0.0
    %98 = vmatpush1.xpose.msra.mxu0 %v57
    %99 = vmatprep.subr.mxu0 0.0
    %100 = vmatpush1.xpose.msra.mxu0 %v56
    %101 = vmatprep.subr.mxu0 0.0
    %102 = vmatpush1.xpose.msra.mxu0 %v55
    %103 = vmatprep.subr.mxu0 0.0
    %104 = vmatpush2.xpose.msra.mxu0 0.0
    %105 = vmatprep.subr.mxu0 0.0
    %106 = vmatpush2.xpose.msra.mxu0 0.0
    %107 = vmatprep.subr.mxu0 0.0
    %108 = vmatpush2.xpose.msra.mxu0 0.0
    %109 = vmatprep.subr.mxu0 0.0
    %110 = vmatpush2.xpose.msra.mxu0 0.0
    %111 = vmatprep.subr.mxu0 0.0
    %112 = vmatpush2.xpose.msra.mxu0 0.0
    %113 = vmatprep.subr.mxu0 0.0
    %114 = vmatpush2.xpose.msra.mxu0 0.0
    %115 = vmatprep.subr.mxu0 0.0
    %116 = vmatpush2.xpose.msra.mxu0 0.0
    %117 = vmatprep.subr.mxu0 0.0
    %118 = vmatpush2.xpose.msra.mxu0 0.0
    %119 = vmatprep.subr.mxu0 0.0
    %120 = vmatpush2.xpose.msra.mxu0 0.0
    %121 = vmatprep.subr.mxu0 0.0
    %122 = vmatpush2.xpose.msra.mxu0 0.0
    %123 = vmatprep.subr.mxu0 0.0
    %124 = vmatpush2.xpose.msra.mxu0 0.0
    %125 = vmatprep.subr.mxu0 0.0
    %126 = vmatpush2.xpose.msra.mxu0 0.0
    %127 = vmatprep.subr.mxu0 0.0
    %128 = vmatpush2.xpose.msra.mxu0 0.0
    %129 = vmatprep.subr.mxu0 0.0
    %130 = vmatpush2.xpose.msra.mxu0 0.0
    %131 = vmatprep.subr.mxu0 0.0
    %132 = vmatpush2.xpose.msra.mxu0 0.0
    %133 = vmatprep.subr.mxu0 0.0
    %134 = vmatpush2.xpose.msra.mxu0 0.0
    %135 = vmatprep.mubr.f32.mxu0 0.0
    %136 = vmatmul.mubr.f32.gmra.mxu0 %v39
    %v137 = vpop.f32.mrf.mxu0
    %v138 = vadd.f32 0.0, %v137
    %v139 = vpop.f32.mrf.mxu0
    %140 = vmatprep.mubr.f32.mxu0 0.0
    %141 = vmatmul.mubr.f32.gmra.mxu0 %v40
    %v142 = vpop.f32.mrf.mxu0
    %v143 = vadd.f32 0.0, %v142
    %v144 = vpop.f32.mrf.mxu0
    %145 = vmatprep.mubr.f32.mxu0 0.0
    %146 = vmatmul.mubr.f32.gmra.mxu0 %v41
    %v147 = vpop.f32.mrf.mxu0
    %v148 = vadd.f32 0.0, %v147
    %v149 = vpop.f32.mrf.mxu0
    %150 = vmatprep.mubr.f32.mxu0 0.0
    %151 = vmatmul.mubr.f32.gmra.mxu0 %v42
    %v152 = vpop.f32.mrf.mxu0
    %v153 = vadd.f32 0.0, %v152
    %v154 = vpop.f32.mrf.mxu0
    %155 = vmatprep.mubr.f32.mxu0 0.0
    %156 = vmatmul.mubr.f32.gmra.mxu0 %v43
    %v157 = vpop.f32.mrf.mxu0
    %v158 = vadd.f32 0.0, %v157
    %v159 = vpop.f32.mrf.mxu0
    %160 = vmatprep.mubr.f32.mxu0 0.0
    %161 = vmatmul.mubr.f32.gmra.mxu0 %v44
    %v162 = vpop.f32.mrf.mxu0
    %v163 = vadd.f32 0.0, %v162
    %v164 = vpop.f32.mrf.mxu0
    %165 = vmatprep.mubr.f32.mxu0 0.0
    %166 = vmatmul.mubr.f32.gmra.mxu0 %v45
    %v167 = vpop.f32.mrf.mxu0
    %v168 = vadd.f32 0.0, %v167
    %v169 = vpop.f32.mrf.mxu0
    %170 = vmatprep.mubr.f32.mxu0 0.0
    %171 = vmatmul.mubr.f32.gmra.mxu0 %v46
    %v172 = vpop.f32.mrf.mxu0
    %v173 = vadd.f32 0.0, %v172
    %v174 = vpop.f32.mrf.mxu0
    %175 = vmatprep.mubr.f32.mxu0 0.0
    %176 = vmatmul.mubr.f32.gmra.mxu0 %v47
    %v177 = vpop.f32.mrf.mxu0
    %v178 = vadd.f32 0.0, %v177
    %v179 = vpop.f32.mrf.mxu0
    %180 = vmatprep.mubr.f32.mxu0 0.0
    %181 = vmatmul.mubr.f32.gmra.mxu0 %v48
    %v182 = vpop.f32.mrf.mxu0
    %v183 = vadd.f32 0.0, %v182
    %v184 = vpop.f32.mrf.mxu0
    %185 = vmatprep.mubr.f32.mxu0 0.0
    %186 = vmatmul.mubr.f32.gmra.mxu0 %v49
    %v187 = vpop.f32.mrf.mxu0
    %v188 = vadd.f32 0.0, %v187
    %v189 = vpop.f32.mrf.mxu0
    %190 = vmatprep.mubr.f32.mxu0 0.0
    %191 = vmatmul.mubr.f32.gmra.mxu0 %v50
    %v192 = vpop.f32.mrf.mxu0
    %v193 = vadd.f32 0.0, %v192
    %v194 = vpop.f32.mrf.mxu0
    %195 = vmatprep.mubr.f32.mxu0 0.0
    %196 = vmatmul.mubr.f32.gmra.mxu0 %v51
    %v197 = vpop.f32.mrf.mxu0
    %v198 = vadd.f32 0.0, %v197
    %v199 = vpop.f32.mrf.mxu0
    %200 = vmatprep.mubr.f32.mxu0 0.0
    %201 = vmatmul.mubr.f32.gmra.mxu0 %v52
    %v202 = vpop.f32.mrf.mxu0
    %v203 = vadd.f32 0.0, %v202
    %v204 = vpop.f32.mrf.mxu0
    %205 = vmatprep.mubr.f32.mxu0 0.0
    %206 = vmatmul.mubr.f32.gmra.mxu0 %v53
    %v207 = vpop.f32.mrf.mxu0
    %v208 = vadd.f32 0.0, %v207
    %v209 = vpop.f32.mrf.mxu0
    %210 = vmatprep.mubr.f32.mxu0 0.0
    %211 = vmatmul.mubr.f32.gmra.mxu0 %v54
    %v212 = vpop.f32.mrf.mxu0
    %v213 = vadd.f32 0.0, %v212
    %v214 = vpop.f32.mrf.mxu0
    %215 = vdwg.mxu0
    %v216 = vld [vmem:[%s2] sm:$0xff]
    %v217 = vld [vmem:[%s2 + $0x8] sm:$0xff]
    %v218 = vld [vmem:[%s2 + $0x10] sm:$0xff]
    %v219 = vld [vmem:[%s2 + $0x18] sm:$0xff]
    %v220 = vld [vmem:[%s2 + $0x20] sm:$0xff]
    %v221 = vld [vmem:[%s2 + $0x28] sm:$0xff]
    %v222 = vld [vmem:[%s2 + $0x30] sm:$0xff]
    %v223 = vld [vmem:[%s2 + $0x38] sm:$0xff]
    %v224 = vld [vmem:[%s2 + $0x40] sm:$0xff]
    %v225 = vld [vmem:[%s2 + $0x48] sm:$0xff]
    %v226 = vld [vmem:[%s2 + $0x50] sm:$0xff]
    %v227 = vld [vmem:[%s2 + $0x58] sm:$0xff]
    %v228 = vld [vmem:[%s2 + $0x60] sm:$0xff]
    %v229 = vld [vmem:[%s2 + $0x68] sm:$0xff]
    %v230 = vld [vmem:[%s2 + $0x70] sm:$0xff]
    %v231 = vld [vmem:[%s2 + $0x78] sm:$0xff]
    %v232 = vld [vmem:[%s3] sm:$0x1]
    %234 = vset.pattern.permute.xlu0 0
    %235 = vperm.xlu0 %234, %v216
    %v236 = vpop.permute.xlu0 %235
    %239 = vset.pattern.permute.xlu0 0
    %240 = vperm.xlu0 %239, %v217
    %v241 = vpop.permute.xlu0 %240
    %244 = vset.pattern.permute.xlu0 0
    %245 = vperm.xlu0 %244, %v218
    %v246 = vpop.permute.xlu0 %245
    %249 = vset.pattern.permute.xlu0 0
    %250 = vperm.xlu0 %249, %v219
    %v251 = vpop.permute.xlu0 %250
    %254 = vset.pattern.permute.xlu0 0
    %255 = vperm.xlu0 %254, %v220
    %v256 = vpop.permute.xlu0 %255
    %259 = vset.pattern.permute.xlu0 0
    %260 = vperm.xlu0 %259, %v221
    %v261 = vpop.permute.xlu0 %260
    %264 = vset.pattern.permute.xlu0 0
    %265 = vperm.xlu0 %264, %v222
    %v266 = vpop.permute.xlu0 %265
    %269 = vset.pattern.permute.xlu0 0
    %270 = vperm.xlu0 %269, %v223
    %v271 = vpop.permute.xlu0 %270
    %274 = vset.pattern.permute.xlu0 0
    %275 = vperm.xlu0 %274, %v224
    %v276 = vpop.permute.xlu0 %275
    %279 = vset.pattern.permute.xlu0 0
    %280 = vperm.xlu0 %279, %v225
    %v281 = vpop.permute.xlu0 %280
    %284 = vset.pattern.permute.xlu0 0
    %285 = vperm.xlu0 %284, %v226
    %v286 = vpop.permute.xlu0 %285
    %289 = vset.pattern.permute.xlu0 0
    %290 = vperm.xlu0 %289, %v227
    %v291 = vpop.permute.xlu0 %290
    %294 = vset.pattern.permute.xlu0 0
    %295 = vperm.xlu0 %294, %v228
    %v296 = vpop.permute.xlu0 %295
    %299 = vset.pattern.permute.xlu0 0
    %300 = vperm.xlu0 %299, %v229
    %v301 = vpop.permute.xlu0 %300
    %304 = vset.pattern.permute.xlu0 0
    %305 = vperm.xlu0 %304, %v230
    %v306 = vpop.permute.xlu0 %305
    %309 = vset.pattern.permute.xlu0 0
    %310 = vperm.xlu0 %309, %v231
    %v311 = vpop.permute.xlu0 %310
    %v314 = vlaneseq
    %v315 = vshrl.u32 %v314, 7
    %v316 = vsub.s32 0, %v315
    %v317 = vrot.slane %v232, %v316
    %v319 = vadd.f32 %v236, %v317
    %v320 = vadd.f32 %v241, %v317
    %v321 = vadd.f32 %v246, %v317
    %v322 = vadd.f32 %v251, %v317
    %v323 = vadd.f32 %v256, %v317
    %v324 = vadd.f32 %v261, %v317
    %v325 = vadd.f32 %v266, %v317
    %v326 = vadd.f32 %v271, %v317
    %v327 = vadd.f32 %v276, %v317
    %v328 = vadd.f32 %v281, %v317
    %v329 = vadd.f32 %v286, %v317
    %v330 = vadd.f32 %v291, %v317
    %v331 = vadd.f32 %v296, %v317
    %v332 = vadd.f32 %v301, %v317
    %v333 = vadd.f32 %v306, %v317
    %v334 = vadd.f32 %v311, %v317
    %v335 = vmul.f32 %v138, 2.0
    %v336 = vmul.f32 %v143, 2.0
    %v337 = vmul.f32 %v148, 2.0
    %v338 = vmul.f32 %v153, 2.0
    %v339 = vmul.f32 %v158, 2.0
    %v340 = vmul.f32 %v163, 2.0
    %v341 = vmul.f32 %v168, 2.0
    %v342 = vmul.f32 %v173, 2.0
    %v343 = vmul.f32 %v178, 2.0
    %v344 = vmul.f32 %v183, 2.0
    %v345 = vmul.f32 %v188, 2.0
    %v346 = vmul.f32 %v193, 2.0
    %v347 = vmul.f32 %v198, 2.0
    %v348 = vmul.f32 %v203, 2.0
    %v349 = vmul.f32 %v208, 2.0
    %v350 = vmul.f32 %v213, 2.0
    %v351 = vsub.f32 %v319, %v335
    %v352 = vsub.f32 %v320, %v336
    %v353 = vsub.f32 %v321, %v337
    %v354 = vsub.f32 %v322, %v338
    %v355 = vsub.f32 %v323, %v339
    %v356 = vsub.f32 %v324, %v340
    %v357 = vsub.f32 %v325, %v341
    %v358 = vsub.f32 %v326, %v342
    %v359 = vsub.f32 %v327, %v343
    %v360 = vsub.f32 %v328, %v344
    %v361 = vsub.f32 %v329, %v345
    %v362 = vsub.f32 %v330, %v346
    %v363 = vsub.f32 %v331, %v347
    %v364 = vsub.f32 %v332, %v348
    %v365 = vsub.f32 %v333, %v349
    %v366 = vsub.f32 %v334, %v350
    %v367 = vmax.f32 %v351, 0.0
    %v368 = vmax.f32 %v352, 0.0
    %v369 = vmax.f32 %v353, 0.0
    %v370 = vmax.f32 %v354, 0.0
    %v371 = vmax.f32 %v355, 0.0
    %v372 = vmax.f32 %v356, 0.0
    %v373 = vmax.f32 %v357, 0.0
    %v374 = vmax.f32 %v358, 0.0
    %v375 = vmax.f32 %v359, 0.0
    %v376 = vmax.f32 %v360, 0.0
    %v377 = vmax.f32 %v361, 0.0
    %v378 = vmax.f32 %v362, 0.0
    %v379 = vmax.f32 %v363, 0.0
    %v380 = vmax.f32 %v364, 0.0
    %v381 = vmax.f32 %v365, 0.0
    %v382 = vmax.f32 %v366, 0.0
    %v383 = vadd.f32 %v367, 1.0
    %v384 = vadd.f32 %v368, 1.0
    %v385 = vadd.f32 %v369, 1.0
    %v386 = vadd.f32 %v370, 1.0
    %v387 = vadd.f32 %v371, 1.0
    %v388 = vadd.f32 %v372, 1.0
    %v389 = vadd.f32 %v373, 1.0
    %v390 = vadd.f32 %v374, 1.0
    %v391 = vadd.f32 %v375, 1.0
    %v392 = vadd.f32 %v376, 1.0
    %v393 = vadd.f32 %v377, 1.0
    %v394 = vadd.f32 %v378, 1.0
    %v395 = vadd.f32 %v379, 1.0
    %v396 = vadd.f32 %v380, 1.0
    %v397 = vadd.f32 %v381, 1.0
    %v398 = vadd.f32 %v382, 1.0
    %v399 = vrcp.pop %v383
    %v400 = vrcp.pop %v384
    %v401 = vrcp.pop %v385
    %v402 = vrcp.pop %v386
    %v403 = vrcp.pop %v387
    %v404 = vrcp.pop %v388
    %v405 = vrcp.pop %v389
    %v406 = vrcp.pop %v390
    %v407 = vrcp.pop %v391
    %v408 = vrcp.pop %v392
    %v409 = vrcp.pop %v393
    %v410 = vrcp.pop %v394
    %v411 = vrcp.pop %v395
    %v412 = vrcp.pop %v396
    %v413 = vrcp.pop %v397
    %v414 = vrcp.pop %v398
    %s415 = smul.u32 0, 128
    %v416 = vlaneseq
    %v417 = vshrl.u32 %v416, 7
    %v418 = vadd.s32 %v417, 8
    %v419 = vadd.s32 %v417, 16
    %v420 = vadd.s32 %v417, 24
    %v421 = vadd.s32 %v417, 32
    %v422 = vadd.s32 %v417, 40
    %v423 = vadd.s32 %v417, 48
    %v424 = vadd.s32 %v417, 56
    %v425 = vadd.s32 %v417, 64
    %v426 = vadd.s32 %v417, 72
    %v427 = vadd.s32 %v417, 80
    %v428 = vadd.s32 %v417, 88
    %v429 = vadd.s32 %v417, 96
    %v430 = vadd.s32 %v417, 104
    %v431 = vadd.s32 %v417, 112
    %v432 = vadd.s32 %v417, 120
    %v433 = vstv %s415
    %v434 = vadd.s32 %v433, %v417
    %v435 = vadd.s32 %v433, %v418
    %v436 = vadd.s32 %v433, %v419
    %v437 = vadd.s32 %v433, %v420
    %v438 = vadd.s32 %v433, %v421
    %v439 = vadd.s32 %v433, %v422
    %v440 = vadd.s32 %v433, %v423
    %v441 = vadd.s32 %v433, %v424
    %v442 = vadd.s32 %v433, %v425
    %v443 = vadd.s32 %v433, %v426
    %v444 = vadd.s32 %v433, %v427
    %v445 = vadd.s32 %v433, %v428
    %v446 = vadd.s32 %v433, %v429
    %v447 = vadd.s32 %v433, %v430
    %v448 = vadd.s32 %v433, %v431
    %v449 = vadd.s32 %v433, %v432
    %v450 = vlaneseq
    %v451 = vand.u32 %v450, 127
    %vm452 = vcmp.lt.s32.totalorder %v434, 32
    %vm453 = vcmp.lt.s32.totalorder %v435, 32
    %vm454 = vcmp.lt.s32.totalorder %v436, 32
    %vm455 = vcmp.lt.s32.totalorder %v437, 32
    %vm456 = vcmp.lt.s32.totalorder %v438, 32
    %vm457 = vcmp.lt.s32.totalorder %v439, 32
    %vm458 = vcmp.lt.s32.totalorder %v440, 32
    %vm459 = vcmp.lt.s32.totalorder %v441, 32
    %vm460 = vcmp.lt.s32.totalorder %v442, 32
    %vm461 = vcmp.lt.s32.totalorder %v443, 32
    %vm462 = vcmp.lt.s32.totalorder %v444, 32
    %vm463 = vcmp.lt.s32.totalorder %v445, 32
    %vm464 = vcmp.lt.s32.totalorder %v446, 32
    %vm465 = vcmp.lt.s32.totalorder %v447, 32
    %vm466 = vcmp.lt.s32.totalorder %v448, 32
    %vm467 = vcmp.lt.s32.totalorder %v449, 32
    %vm468 = vcmp.lt.s32.totalorder %v451, 32
    %vm469 = vmand %vm452, %vm468
    %vm470 = vmand %vm453, %vm468
    %vm471 = vmand %vm454, %vm468
    %vm472 = vmand %vm455, %vm468
    %vm473 = vmand %vm456, %vm468
    %vm474 = vmand %vm457, %vm468
    %vm475 = vmand %vm458, %vm468
    %vm476 = vmand %vm459, %vm468
    %vm477 = vmand %vm460, %vm468
    %vm478 = vmand %vm461, %vm468
    %vm479 = vmand %vm462, %vm468
    %vm480 = vmand %vm463, %vm468
    %vm481 = vmand %vm464, %vm468
    %vm482 = vmand %vm465, %vm468
    %vm483 = vmand %vm466, %vm468
    %vm484 = vmand %vm467, %vm468
    %vm485 = vcmp.ne.s32.totalorder %v434, %v451
    %vm486 = vcmp.ne.s32.totalorder %v435, %v451
    %vm487 = vcmp.ne.s32.totalorder %v436, %v451
    %vm488 = vcmp.ne.s32.totalorder %v437, %v451
    %vm489 = vcmp.ne.s32.totalorder %v438, %v451
    %vm490 = vcmp.ne.s32.totalorder %v439, %v451
    %vm491 = vcmp.ne.s32.totalorder %v440, %v451
    %vm492 = vcmp.ne.s32.totalorder %v441, %v451
    %vm493 = vcmp.ne.s32.totalorder %v442, %v451
    %vm494 = vcmp.ne.s32.totalorder %v443, %v451
    %vm495 = vcmp.ne.s32.totalorder %v444, %v451
    %vm496 = vcmp.ne.s32.totalorder %v445, %v451
    %vm497 = vcmp.ne.s32.totalorder %v446, %v451
    %vm498 = vcmp.ne.s32.totalorder %v447, %v451
    %vm499 = vcmp.ne.s32.totalorder %v448, %v451
    %vm500 = vcmp.ne.s32.totalorder %v449, %v451
    %vm501 = vmand %vm469, %vm485
    %vm502 = vmand %vm470, %vm486
    %vm503 = vmand %vm471, %vm487
    %vm504 = vmand %vm472, %vm488
    %vm505 = vmand %vm473, %vm489
    %vm506 = vmand %vm474, %vm490
    %vm507 = vmand %vm475, %vm491
    %vm508 = vmand %vm476, %vm492
    %vm509 = vmand %vm477, %vm493
    %vm510 = vmand %vm478, %vm494
    %vm511 = vmand %vm479, %vm495
    %vm512 = vmand %vm480, %vm496
    %vm513 = vmand %vm481, %vm497
    %vm514 = vmand %vm482, %vm498
    %vm515 = vmand %vm483, %vm499
    %vm516 = vmand %vm484, %vm500
    %v517 = vld [vmem:[#allocation2] sm:$0x1]
    %v518 = vsel %vm501, %v399, 0.0
    %v519 = vsel %vm502, %v400, 0.0
    %v520 = vsel %vm503, %v401, 0.0
    %v521 = vsel %vm504, %v402, 0.0
    %v522 = vsel %vm505, %v403, 0.0
    %v523 = vsel %vm506, %v404, 0.0
    %v524 = vsel %vm507, %v405, 0.0
    %v525 = vsel %vm508, %v406, 0.0
    %v526 = vsel %vm509, %v407, 0.0
    %v527 = vsel %vm510, %v408, 0.0
    %v528 = vsel %vm511, %v409, 0.0
    %v529 = vsel %vm512, %v410, 0.0
    %v530 = vsel %vm513, %v411, 0.0
    %v531 = vsel %vm514, %v412, 0.0
    %v532 = vsel %vm515, %v413, 0.0
    %v533 = vsel %vm516, %v414, 0.0
    %v534 = vadd.f32 %v518, %v519
    %v535 = vadd.f32 %v534, %v520
    %v536 = vadd.f32 %v535, %v521
    %v537 = vadd.f32 %v536, %v522
    %v538 = vadd.f32 %v537, %v523
    %v539 = vadd.f32 %v538, %v524
    %v540 = vadd.f32 %v539, %v525
    %v541 = vadd.f32 %v540, %v526
    %v542 = vadd.f32 %v541, %v527
    %v543 = vadd.f32 %v542, %v528
    %v544 = vadd.f32 %v543, %v529
    %v545 = vadd.f32 %v544, %v530
    %v546 = vadd.f32 %v545, %v531
    %v547 = vadd.f32 %v546, %v532
    %v548 = vadd.f32 %v547, %v533
    %549 = vadd.xlane.f32.xlu0 %v548
    %v550 = vpop.xlane.xlu0 %549
    %v551 = vrot.slane %v550, 4
    %v552 = vadd.f32 %v550, %v551
    %v553 = vrot.slane %v552, 2
    %v554 = vadd.f32 %v552, %v553
    %v555 = vrot.slane %v554, 1
    %v556 = vadd.f32 %v554, %v555
    %s557 = vtos %v556
    %v558 = vstv %s557
    %v559 = vstv %s38
    %v560 = vmul.f32 %v559, %v558
    %v561 = vadd.f32 %v517, %v560
    %vm562 = vcmask 0
    %563 = vst.msk [vmem:[#allocation2] sm:$0x1] %vm562, %v561
    // Predicated region
    $region26: #{tpu_custom_call.1} parent=1 // pred_check
      %p564 = pneg %p32
    $region27: #{tpu_custom_call.1} parent=1 // pred_check_branch
      %566 = sbr.rel (%p564) target = $region29
    $region28: #{tpu_custom_call.1} parent=1 // pred_region
      %vm567 = vcmp.eq.s32.totalorder %v417, 0
      %vm568 = vcmp.eq.s32.totalorder %v451, 0
      %vm569 = vmand %vm567, %vm568
      %v570 = vsel %vm569, 1, 0
      %v571 = vcvt.s32.f32 %v570
      %v572 = vld [vmem:[#allocation2] sm:$0x1]
      %v574 = vlaneseq
      %v575 = vshrl.u32 %v574, 7
      %v576 = vsub.s32 0, %v575
      %v577 = vrot.slane %v572, %v576
      %578 = vset.pattern.permute.xlu0 0
      %579 = vperm.xlu0 %578, %v577
      %v580 = vpop.permute.xlu0 %579
      %v582 = vmul.f32 %v580, %v571
      %583 = vst [vmem:[#allocation6] sm:$0xff] %v582
    $region29: #{tpu_custom_call.1} parent=1 // pred_fallthru
      _
    // Predicated region
    $region30: #{tpu_custom_call.1} parent=1 // pred_check
      _
    $region31: #{tpu_custom_call.1} parent=1 // pred_check_branch
      %585 = sbr.rel (0) target = $region33
    $region32: #{tpu_custom_call.1} parent=1 // pred_region
      %s587 = ssub.s32 128, 128
      %588 = vsyncadd [#allocation5], %s587
      %s590 = sshll.u32 [#allocation6], 4
      %s591 = int_to_ptr.vmem [resolvable:$true] %s590
      %593 = dma.vmem_to_hbm [thread:$0]  %s591, 128, %s4, [#allocation5]
    $region33: #{tpu_custom_call.1} parent=1 // pred_fallthru
      _
    // Predicated region
    $region34: #{tpu_custom_call.1} parent=1 // pred_check
      _
    $region35: #{tpu_custom_call.1} parent=1 // pred_check_branch
      %595 = sbr.rel (0) target = $region37
    $region36: #{tpu_custom_call.1} parent=1 // pred_region
      %596 = dma.done [#allocation5], 128
    $region37: #{tpu_custom_call.1} parent=1 // pred_fallthru
      _
    %597 = vsyncpa [#allocation4], 1
    %598 = vsyncpa [#allocation5], 1

</llo_original>
